<compile_context>
chip_gen: v5e
topology: v5e:2x2
jax: 0.10.0
libtpu: 0.0.40
codegen_flags: <defaults>
</compile_context>

<pallas_src>
import functools

import jax
import jax.numpy as jnp
import numpy as np
from jax.experimental import pallas as pl
from jax.experimental.pallas import tpu as pltpu


# --------------------------------------------------------------------------
# Kernel: one batch block per grid step.
#   a_ref: [bt, N,  Dp]   p_ref: [bt, Mp, Dp]   n_ref: [bt, Mn, Dp]
#   o_ref: [bt, 128] f32  (per-sample loss broadcast across lanes; wrapper
#                          reads column 0)
# --------------------------------------------------------------------------
def _triplet_colbert_kernel(a_ref, p_ref, n_ref, o_ref, *, margin):
    a = a_ref[...]                                           # input dtype

    # Positive branch is fully reduced before the negative similarity block
    # is computed, so only one [bt, N, M] f32 slab is live at a time.
    sim_p = jnp.einsum('bnd,bmd->bnm', a, p_ref[...],
                       preferred_element_type=jnp.float32)
    pos = jnp.sum(jnp.max(sim_p, axis=-1), axis=-1, keepdims=True)   # [bt, 1]

    sim_n = jnp.einsum('bnd,bmd->bnm', a, n_ref[...],
                       preferred_element_type=jnp.float32)
    neg = jnp.sum(jnp.max(sim_n, axis=-1), axis=-1, keepdims=True)   # [bt, 1]

    loss = jnp.maximum(neg - pos + margin, 0.0)                      # [bt, 1]
    # lane-dense (bt, 128) store; column 0 is consumed by the wrapper
    o_ref[...] = jnp.broadcast_to(loss, o_ref.shape).astype(o_ref.dtype)


def _vmem_budget_and_cap():
    """Generation-aware (working-set budget, physical VMEM capacity) in bytes."""
    try:
        cap = int(pltpu.get_tpu_info().vmem_capacity_bytes)
    except Exception:
        cap = 128 << 20
    if cap <= (64 << 20):            # v7x-class: 64 MiB physical VMEM per TC
        return 24 << 20, cap
    return 48 << 20, cap             # v5e / v6e: 128 MiB physical VMEM


def _round_up(x, m):
    return ((x + m - 1) // m) * m


def triplet_colbert_loss_pallas(anchor, positive, negative, margin=0.2,
                                batch_block=None):
    B, N, D = anchor.shape
    Bp, Mp, Dp = positive.shape
    Bn, Mn, Dn = negative.shape
    assert B == Bp == Bn and D == Dp == Dn

    # Keep the caller's dtype (no forced f32 upcast); only unify mixed dtypes.
    dtype = jnp.promote_types(jnp.promote_types(anchor.dtype, positive.dtype),
                              negative.dtype)
    anchor, positive, negative = (x.astype(dtype)
                                  for x in (anchor, positive, negative))
    itemsize = jnp.dtype(dtype).itemsize

    # Pad the embedding (lane / contraction) dim to a multiple of 128.
    # Zero padding is numerically exact for the dot products.
    D_pad = _round_up(D, 128)
    if D_pad != D:
        padd = ((0, 0), (0, 0), (0, D_pad - D))
        anchor = jnp.pad(anchor, padd)
        positive = jnp.pad(positive, padd)
        negative = jnp.pad(negative, padd)

    # Per-batch-element working set: double-buffered inputs + both f32 sims.
    per_batch = 2 * (N + Mp + Mn) * D_pad * itemsize + N * (Mp + Mn) * 4
    budget, cap = _vmem_budget_and_cap()
    bt_max = max(1, budget // per_batch)
    if batch_block is not None:
        bt_max = max(1, min(bt_max, int(batch_block)))
    if bt_max >= B:
        bt = B                               # whole batch in a single grid step
    else:
        bt = max(8, (bt_max // 8) * 8)       # tiled path: sublane multiple of 8

    grid_n = -(-B // bt)
    B_pad = grid_n * bt
    if B_pad != B:
        padb = ((0, B_pad - B), (0, 0), (0, 0))
        anchor = jnp.pad(anchor, padb)
        positive = jnp.pad(positive, padb)
        negative = jnp.pad(negative, padb)

    need = bt * per_batch + 2 * bt * 128 * 4 + (4 << 20)
    vmem_limit = int(min(max(need + (8 << 20), 32 << 20), int(cap * 0.8)))

    # TODO(synk): margin is baked as a compile-time constant; move it to an
    # SMEM scalar if callers vary it frequently.
    kern = functools.partial(_triplet_colbert_kernel, margin=float(margin))
    out = pl.pallas_call(
        kern,
        out_shape=jax.ShapeDtypeStruct((B_pad, 128), jnp.float32),
        grid=(grid_n,),
        in_specs=[
            pl.BlockSpec((bt, N, D_pad), lambda i: (i, 0, 0)),
            pl.BlockSpec((bt, Mp, D_pad), lambda i: (i, 0, 0)),
            pl.BlockSpec((bt, Mn, D_pad), lambda i: (i, 0, 0)),
        ],
        out_specs=pl.BlockSpec((bt, 128), lambda i: (i, 0)),
        compiler_params=pltpu.CompilerParams(
            dimension_semantics=("parallel",),
            vmem_limit_bytes=vmem_limit),
    )(anchor, positive, negative)

    # Batch mean over the real samples (padded rows sliced away) in plain JAX.
    return jnp.mean(out[:B, 0])


class TripletColbertLossPallas:
    """Pallas equivalent of TripletColbertLoss (forward only)."""

    def __init__(self, margin=0.2):
        self.margin = float(margin)

    def __call__(self, anchor, positive, negative):
        return triplet_colbert_loss_pallas(anchor, positive, negative,
                                           margin=self.margin)


# --------------------------------------------------------------------------
# Pure-JAX reference (mirrors the PyTorch module) for verification
# --------------------------------------------------------------------------
def _colbert_score_ref(X, Y):
    sim = jnp.einsum('bnd,bmd->bnm', X, Y)
    return jnp.sum(jnp.max(sim, axis=-1), axis=-1)


def _triplet_colbert_ref(anchor, positive, negative, margin):
    pos = _colbert_score_ref(anchor, positive)
    neg = _colbert_score_ref(anchor, negative)
    return jnp.mean(jnp.maximum(neg - pos + margin, 0.0))


if __name__ == "__main__":
    key = jax.random.PRNGKey(0)
    ka, kp, kn, kn2 = jax.random.split(key, 4)

    # small shapes: batch=2, anchor tokens=8, doc tokens=8, embed=32
    B, N, M, D = 2, 8, 8, 32
    anchor = jax.random.normal(ka, (B, N, D), jnp.float32)
    positive = jax.random.normal(kp, (B, M, D), jnp.float32)
    negative = jax.random.normal(kn, (B, M, D), jnp.float32)

    # case 1: f32 inputs, small margin
    loss_fn = TripletColbertLossPallas(margin=0.2)
    out = jax.block_until_ready(loss_fn(anchor, positive, negative))
    assert out.shape == ()
    assert bool(jnp.isfinite(out))
    ref = _triplet_colbert_ref(anchor, positive, negative, 0.2)
    np.testing.assert_allclose(np.asarray(out), np.asarray(ref),
                               atol=1e-3, rtol=1e-3)

    # case 2: bf16 inputs (no upcast inside the kernel), asymmetric token
    # counts, large margin so the hinge is guaranteed active
    a_bf = anchor.astype(jnp.bfloat16)
    p_bf = positive.astype(jnp.bfloat16)
    n2_bf = jax.random.normal(kn2, (B, 2 * M, D), jnp.float32).astype(
        jnp.bfloat16)
    out2 = jax.block_until_ready(
        triplet_colbert_loss_pallas(a_bf, p_bf, n2_bf, margin=5.0))
    ref2 = _triplet_colbert_ref(a_bf.astype(jnp.float32),
                                p_bf.astype(jnp.float32),
                                n2_bf.astype(jnp.float32), 5.0)
    np.testing.assert_allclose(np.asarray(out2), np.asarray(ref2),
                               atol=2e-3, rtol=2e-3)

    # case 3: non-divisible batch with a forced small batch block
    # (exercises the multi-step grid + batch-padding path)
    k3a, k3p, k3n = jax.random.split(jax.random.PRNGKey(1), 3)
    B3 = 20
    a3 = jax.random.normal(k3a, (B3, N, D), jnp.float32)
    p3 = jax.random.normal(k3p, (B3, M, D), jnp.float32)
    n3 = jax.random.normal(k3n, (B3, 2 * M, D), jnp.float32)
    out3 = jax.block_until_ready(
        triplet_colbert_loss_pallas(a3, p3, n3, margin=0.5, batch_block=8))
    ref3 = _triplet_colbert_ref(a3, p3, n3, 0.5)
    np.testing.assert_allclose(np.asarray(out3), np.asarray(ref3),
                               atol=1e-3, rtol=1e-3)

    print("KERNEL_OK")
</pallas_src>

<mosaic_0001>
module attributes {stable_mosaic.version = 11 : i64} {
  func.func @_triplet_colbert_kernel(%arg0: i32, %arg1: memref<2x8x128xf32, #tpu.memory_space<vmem>>, %arg2: memref<2x8x128xf32, #tpu.memory_space<vmem>>, %arg3: memref<2x8x128xf32, #tpu.memory_space<vmem>>, %arg4: memref<2x128xf32, #tpu.memory_space<vmem>>) attributes {dimension_semantics = [#tpu.dimension_semantics<parallel>], iteration_bounds = array<i64: 1>, scalar_prefetch = 0 : i64, scratch_operands = 0 : i64, tpu.core_type = #tpu.core_type<tc>, window_params = [{transform_indices = @transform_0, window_bounds = array<i64: 2, 8, 128>}, {transform_indices = @transform_1, window_bounds = array<i64: 2, 8, 128>}, {transform_indices = @transform_2, window_bounds = array<i64: 2, 8, 128>}, {transform_indices = @transform_3, window_bounds = array<i64: 2, 128>}]} {
    %c0 = arith.constant 0 : index
    %c0_0 = arith.constant 0 : index
    %c0_1 = arith.constant 0 : index
    %0 = vector.load %arg1[%c0, %c0_0, %c0_1] : memref<2x8x128xf32, #tpu.memory_space<vmem>>, vector<2x8x128xf32>
    %c0_2 = arith.constant 0 : index
    %c0_3 = arith.constant 0 : index
    %c0_4 = arith.constant 0 : index
    %1 = vector.load %arg2[%c0_2, %c0_3, %c0_4] : memref<2x8x128xf32, #tpu.memory_space<vmem>>, vector<2x8x128xf32>
    "tpu.trace_start"() <{level = 10 : i32, message = "bnd,bmd->bnm"}> : () -> ()
    %cst = arith.constant dense<0.000000e+00> : vector<2x8x8xf32>
    %2 = tpu.matmul %0, %1, %cst {dimension_numbers = #tpu.dot_dimension_numbers<[2], [2], [1], [1], [0, 0, 0, 1, 1, 1], [0], [0]>} : vector<2x8x128xf32>, vector<2x8x128xf32>, vector<2x8x8xf32> -> vector<2x8x8xf32>
    "tpu.trace_stop"() : () -> ()
    %cst_5 = arith.constant dense<0xFF800000> : vector<2x8xf32>
    %3 = vector.multi_reduction <maximumf>, %2, %cst_5 [2] : vector<2x8x8xf32> to vector<2x8xf32>
    %cst_6 = arith.constant dense<0.000000e+00> : vector<2xf32>
    %4 = vector.multi_reduction <add>, %3, %cst_6 [1] : vector<2x8xf32> to vector<2xf32>
    %5 = vector.shape_cast %4 : vector<2xf32> to vector<2x1xf32>
    %c0_7 = arith.constant 0 : index
    %c0_8 = arith.constant 0 : index
    %c0_9 = arith.constant 0 : index
    %6 = vector.load %arg3[%c0_7, %c0_8, %c0_9] : memref<2x8x128xf32, #tpu.memory_space<vmem>>, vector<2x8x128xf32>
    "tpu.trace_start"() <{level = 10 : i32, message = "bnd,bmd->bnm"}> : () -> ()
    %cst_10 = arith.constant dense<0.000000e+00> : vector<2x8x8xf32>
    %7 = tpu.matmul %0, %6, %cst_10 {dimension_numbers = #tpu.dot_dimension_numbers<[2], [2], [1], [1], [0, 0, 0, 1, 1, 1], [0], [0]>} : vector<2x8x128xf32>, vector<2x8x128xf32>, vector<2x8x8xf32> -> vector<2x8x8xf32>
    "tpu.trace_stop"() : () -> ()
    %cst_11 = arith.constant dense<0xFF800000> : vector<2x8xf32>
    %8 = vector.multi_reduction <maximumf>, %7, %cst_11 [2] : vector<2x8x8xf32> to vector<2x8xf32>
    %cst_12 = arith.constant dense<0.000000e+00> : vector<2xf32>
    %9 = vector.multi_reduction <add>, %8, %cst_12 [1] : vector<2x8xf32> to vector<2xf32>
    %10 = vector.shape_cast %9 : vector<2xf32> to vector<2x1xf32>
    %11 = arith.subf %10, %5 : vector<2x1xf32>
    %cst_13 = arith.constant 2.000000e-01 : f32
    %12 = vector.broadcast %cst_13 : f32 to vector<2x1xf32>
    %13 = arith.addf %11, %12 : vector<2x1xf32>
    %cst_14 = arith.constant 0.000000e+00 : f32
    %14 = vector.broadcast %cst_14 : f32 to vector<2x1xf32>
    %15 = arith.maximumf %13, %14 : vector<2x1xf32>
    %16 = vector.shape_cast %15 : vector<2x1xf32> to vector<2x1xf32>
    %17 = vector.broadcast %16 : vector<2x1xf32> to vector<2x128xf32>
    %c0_15 = arith.constant 0 : index
    %c0_16 = arith.constant 0 : index
    %18 = vector.load %arg4[%c0_15, %c0_16] : memref<2x128xf32, #tpu.memory_space<vmem>>, vector<2x128xf32>
    tpu.vector_store %arg4[%c0_15, %c0_16], %17 {strides = array<i32>} : memref<2x128xf32, #tpu.memory_space<vmem>>, vector<2x128xf32>,
    return
  }
  func.func @transform_0(%arg0: i32) -> (i32, i32, i32) {
    %c0_i32 = arith.constant 0 : i32
    %c0_i32_0 = arith.constant 0 : i32
    %c0_i32_1 = arith.constant 0 : i32
    return %arg0, %c0_i32, %c0_i32_0 : i32, i32, i32
  }
  func.func @transform_1(%arg0: i32) -> (i32, i32, i32) {
    %c0_i32 = arith.constant 0 : i32
    %c0_i32_0 = arith.constant 0 : i32
    %c0_i32_1 = arith.constant 0 : i32
    return %arg0, %c0_i32, %c0_i32_0 : i32, i32, i32
  }
  func.func @transform_2(%arg0: i32) -> (i32, i32, i32) {
    %c0_i32 = arith.constant 0 : i32
    %c0_i32_0 = arith.constant 0 : i32
    %c0_i32_1 = arith.constant 0 : i32
    return %arg0, %c0_i32, %c0_i32_0 : i32, i32, i32
  }
  func.func @transform_3(%arg0: i32) -> (i32, i32) {
    %c0_i32 = arith.constant 0 : i32
    %c0_i32_0 = arith.constant 0 : i32
    return %arg0, %c0_i32 : i32, i32
  }
}

</mosaic_0001>

<llo_original>
// kernel: tpu_custom_call.1
$region0: #{tpu_custom_call.1}
  #allocation0 [shape = 'u32[]', space=smem, size = 0x4, offset = 0x4, fixed_abs, tag = 'smem constant byte address 0x4 - core index']
  #allocation1 [shape = 'u32[72,128]{1,0:T(1,128)}', space=vmem, size = 0x9000, scoped, tag = 'internal scratch']
  %s0 = inlined_call_operand.hbm [shape: f32[2,8,128], index: 0, kind: input, shape index: {}]
  %s1 = inlined_call_operand.hbm [shape: f32[2,8,128], index: 1, kind: input, shape index: {}]
  %s2 = inlined_call_operand.hbm [shape: f32[2,8,128], index: 2, kind: input, shape index: {}]
  %s3 = inlined_call_operand.hbm [shape: f32[2,128], index: 3, kind: output, shape index: {}]
  %s4 = sld [smem:[#allocation0]]
  $region34: #{tpu_custom_call.1} parent=0
    _
  %s6 = ssub.s32 1, %s4
  %s7 = scalar_select 0, %s6, %s4
  $region1: #{tpu_custom_call.1} parent=0
    #allocation2 [shape = 'u8[8192]{0}', space=vmem, size = 0x2000, scoped, tag = 'input window, operand 0, single buffered']
    #allocation3 [shape = 's32[1]{0}', space=sflag, size = 0x4, scoped, tag = 'scoped memory for tpu_custom_call.1']
    #allocation4 [shape = 's32[1]{0}', space=sflag, size = 0x4, scoped, tag = 'scoped memory for tpu_custom_call.1']
    #allocation5 [shape = 'u8[8192]{0}', space=vmem, size = 0x2000, scoped, tag = 'input window, operand 1, single buffered']
    #allocation6 [shape = 's32[1]{0}', space=sflag, size = 0x4, scoped, tag = 'scoped memory for tpu_custom_call.1']
    #allocation7 [shape = 'u8[8192]{0}', space=vmem, size = 0x2000, scoped, tag = 'input window, operand 2, single buffered']
    #allocation8 [shape = 'u8[1024]{0}', space=vmem, size = 0x400, scoped, tag = 'output window, operand 0, single buffered']
    %8 = vsyncpa [#allocation3], 0
    %9 = vsyncpa [#allocation6], 0
    %10 = vsyncpa [#allocation4], 0
    // Predicated region
    $region2: #{tpu_custom_call.1} parent=1 // pred_check
      _
    $region3: #{tpu_custom_call.1} parent=1 // pred_check_branch
      %12 = sbr.rel (0) target = $region5
    $region4: #{tpu_custom_call.1} parent=1 // pred_region
      %14 = vsyncadd [#allocation3], 0
      %s15 = sshll.u32 %s0, 4
      %s16 = int_to_ptr.hbm [resolvable:$true] %s15
      %s17 = sshll.u32 [#allocation2], 4
      %s18 = int_to_ptr.vmem [resolvable:$true] %s17
      %23 = dma.hbm_to_vmem [thread:$0]  %s16, 256, %s18, [#allocation3], 128, 128, 8
    $region5: #{tpu_custom_call.1} parent=1 // pred_fallthru
      _
    // Predicated region
    $region6: #{tpu_custom_call.1} parent=1 // pred_check
      _
    $region7: #{tpu_custom_call.1} parent=1 // pred_check_branch
      %25 = sbr.rel (0) target = $region9
    $region8: #{tpu_custom_call.1} parent=1 // pred_region
      %27 = vsyncadd [#allocation6], 0
      %s28 = sshll.u32 %s1, 4
      %s29 = int_to_ptr.hbm [resolvable:$true] %s28
      %s30 = sshll.u32 [#allocation5], 4
      %s31 = int_to_ptr.vmem [resolvable:$true] %s30
      %36 = dma.hbm_to_vmem [thread:$0]  %s29, 256, %s31, [#allocation6], 128, 128, 8
    $region9: #{tpu_custom_call.1} parent=1 // pred_fallthru
      _
    // Predicated region
    $region10: #{tpu_custom_call.1} parent=1 // pred_check
      _
    $region11: #{tpu_custom_call.1} parent=1 // pred_check_branch
      %38 = sbr.rel (0) target = $region13
    $region12: #{tpu_custom_call.1} parent=1 // pred_region
      %40 = vsyncadd [#allocation6], 0
      %s41 = sshll.u32 %s2, 4
      %s42 = int_to_ptr.hbm [resolvable:$true] %s41
      %s43 = sshll.u32 [#allocation7], 4
      %s44 = int_to_ptr.vmem [resolvable:$true] %s43
      %49 = dma.hbm_to_vmem [thread:$0]  %s42, 256, %s44, [#allocation6], 128, 128, 8
    $region13: #{tpu_custom_call.1} parent=1 // pred_fallthru
      _
    // Predicated region
    $region14: #{tpu_custom_call.1} parent=1 // pred_check
      _
    $region15: #{tpu_custom_call.1} parent=1 // pred_check_branch
      %51 = sbr.rel (0) target = $region17
    $region16: #{tpu_custom_call.1} parent=1 // pred_region
      %53 = dma.done [#allocation3], 256
    $region17: #{tpu_custom_call.1} parent=1 // pred_fallthru
      _
    // Predicated region
    $region18: #{tpu_custom_call.1} parent=1 // pred_check
      _
    $region19: #{tpu_custom_call.1} parent=1 // pred_check_branch
      %55 = sbr.rel (0) target = $region21
    $region20: #{tpu_custom_call.1} parent=1 // pred_region
      %57 = dma.done [#allocation6], 256
    $region21: #{tpu_custom_call.1} parent=1 // pred_fallthru
      _
    // Predicated region
    $region22: #{tpu_custom_call.1} parent=1 // pred_check
      _
    $region23: #{tpu_custom_call.1} parent=1 // pred_check_branch
      %59 = sbr.rel (0) target = $region25
    $region24: #{tpu_custom_call.1} parent=1 // pred_region
      %61 = dma.done [#allocation6], 256
    $region25: #{tpu_custom_call.1} parent=1 // pred_fallthru
      _
    %v62 = vld [vmem:[#allocation2] sm:$0xff]
    %v63 = vld [vmem:[#allocation2 + $0x8] sm:$0xff]
    %v64 = vld [vmem:[#allocation5] sm:$0xff]
    %v65 = vld [vmem:[#allocation5 + $0x8] sm:$0xff]
    %66 = vmatpush.xpose.msra.mxu0 0.0
    %67 = vmatpush.xpose.msra.mxu0 0.0
    %68 = vmatpush.xpose.msra.mxu0 0.0
    %69 = vmatpush.xpose.msra.mxu0 0.0
    %70 = vmatpush.xpose.msra.mxu0 0.0
    %71 = vmatpush.xpose.msra.mxu0 0.0
    %72 = vmatpush.xpose.msra.mxu0 0.0
    %73 = vmatpush.xpose.msra.mxu0 0.0
    %74 = vmatpush.xpose.msra.mxu0 0.0
    %75 = vmatpush.xpose.msra.mxu0 0.0
    %76 = vmatpush.xpose.msra.mxu0 0.0
    %77 = vmatpush.xpose.msra.mxu0 0.0
    %78 = vmatpush.xpose.msra.mxu0 0.0
    %79 = vmatpush.xpose.msra.mxu0 0.0
    %80 = vmatpush.xpose.msra.mxu0 0.0
    %81 = vmatpush.xpose.msra.mxu0 %v64
    %82 = vmatmul.f32.gmra.mxu0 %v62
    %v83 = vpop.f32.mrf.mxu0
    %v84 = vadd.f32 0.0, %v83
    %85 = vdwg.mxu0
    %86 = vmatpush.xpose.msra.mxu0 0.0
    %87 = vmatpush.xpose.msra.mxu0 0.0
    %88 = vmatpush.xpose.msra.mxu0 0.0
    %89 = vmatpush.xpose.msra.mxu0 0.0
    %90 = vmatpush.xpose.msra.mxu0 0.0
    %91 = vmatpush.xpose.msra.mxu0 0.0
    %92 = vmatpush.xpose.msra.mxu0 0.0
    %93 = vmatpush.xpose.msra.mxu0 0.0
    %94 = vmatpush.xpose.msra.mxu0 0.0
    %95 = vmatpush.xpose.msra.mxu0 0.0
    %96 = vmatpush.xpose.msra.mxu0 0.0
    %97 = vmatpush.xpose.msra.mxu0 0.0
    %98 = vmatpush.xpose.msra.mxu0 0.0
    %99 = vmatpush.xpose.msra.mxu0 0.0
    %100 = vmatpush.xpose.msra.mxu0 0.0
    %101 = vmatpush.xpose.msra.mxu0 %v65
    %102 = vmatmul.f32.gmra.mxu0 %v63
    %v103 = vpop.f32.mrf.mxu0
    %v104 = vadd.f32 0.0, %v103
    %105 = vdwg.mxu0
    %vm106 = vcmask 64512
    %v107 = vsel %vm106, %v84, -inf
    %108 = vmax.xlane.f32.xlu0 %v107
    %v109 = vpop.xlane.xlu0 %108
    %v110 = vsel %vm106, %v104, -inf
    %111 = vmax.xlane.f32.xlu0 %v110
    %v112 = vpop.xlane.xlu0 %111
    %v115 = vlaneseq
    %v116 = vand.u32 %v115, 127
    %v117 = vperm.slane %v109, %v116
    %v118 = vperm.slane %v112, %v116
    %vm119 = vcmask 1041409
    %v120 = vsel %vm119, %v118, %v117
    %vm122 = vcmask 58368
    %v123 = vsel %vm122, %v120, 0.0
    %124 = vadd.xlane.f32.xlu0 %v123
    %v125 = vpop.xlane.xlu0 %124
    %v126 = vld [vmem:[#allocation7] sm:$0xff]
    %v127 = vld [vmem:[#allocation7 + $0x8] sm:$0xff]
    %128 = vmatpush.xpose.msra.mxu0 0.0
    %129 = vmatpush.xpose.msra.mxu0 0.0
    %130 = vmatpush.xpose.msra.mxu0 0.0
    %131 = vmatpush.xpose.msra.mxu0 0.0
    %132 = vmatpush.xpose.msra.mxu0 0.0
    %133 = vmatpush.xpose.msra.mxu0 0.0
    %134 = vmatpush.xpose.msra.mxu0 0.0
    %135 = vmatpush.xpose.msra.mxu0 0.0
    %136 = vmatpush.xpose.msra.mxu0 0.0
    %137 = vmatpush.xpose.msra.mxu0 0.0
    %138 = vmatpush.xpose.msra.mxu0 0.0
    %139 = vmatpush.xpose.msra.mxu0 0.0
    %140 = vmatpush.xpose.msra.mxu0 0.0
    %141 = vmatpush.xpose.msra.mxu0 0.0
    %142 = vmatpush.xpose.msra.mxu0 0.0
    %143 = vmatpush.xpose.msra.mxu0 %v126
    %144 = vmatmul.f32.gmra.mxu0 %v62
    %v145 = vpop.f32.mrf.mxu0
    %v146 = vadd.f32 0.0, %v145
    %147 = vdwg.mxu0
    %148 = vmatpush.xpose.msra.mxu0 0.0
    %149 = vmatpush.xpose.msra.mxu0 0.0
    %150 = vmatpush.xpose.msra.mxu0 0.0
    %151 = vmatpush.xpose.msra.mxu0 0.0
    %152 = vmatpush.xpose.msra.mxu0 0.0
    %153 = vmatpush.xpose.msra.mxu0 0.0
    %154 = vmatpush.xpose.msra.mxu0 0.0
    %155 = vmatpush.xpose.msra.mxu0 0.0
    %156 = vmatpush.xpose.msra.mxu0 0.0
    %157 = vmatpush.xpose.msra.mxu0 0.0
    %158 = vmatpush.xpose.msra.mxu0 0.0
    %159 = vmatpush.xpose.msra.mxu0 0.0
    %160 = vmatpush.xpose.msra.mxu0 0.0
    %161 = vmatpush.xpose.msra.mxu0 0.0
    %162 = vmatpush.xpose.msra.mxu0 0.0
    %163 = vmatpush.xpose.msra.mxu0 %v127
    %164 = vmatmul.f32.gmra.mxu0 %v63
    %v165 = vpop.f32.mrf.mxu0
    %v166 = vadd.f32 0.0, %v165
    %167 = vdwg.mxu0
    %v168 = vsel %vm106, %v146, -inf
    %169 = vmax.xlane.f32.xlu0 %v168
    %v170 = vpop.xlane.xlu0 %169
    %v171 = vsel %vm106, %v166, -inf
    %172 = vmax.xlane.f32.xlu0 %v171
    %v173 = vpop.xlane.xlu0 %172
    %v176 = vperm.slane %v170, %v116
    %v177 = vperm.slane %v173, %v116
    %v178 = vsel %vm119, %v177, %v176
    %v180 = vsel %vm122, %v178, 0.0
    %181 = vadd.xlane.f32.xlu0 %v180
    %v182 = vpop.xlane.xlu0 %181
    %v183 = vsub.f32 %v182, %v125
    %v184 = vadd.f32 %v183, 0.2
    %v185 = vmax.f32 %v184, 0.0
    %186 = vst [vmem:[#allocation8] sm:$0x3] %v185
    // Predicated region
    $region26: #{tpu_custom_call.1} parent=1 // pred_check
      _
    $region27: #{tpu_custom_call.1} parent=1 // pred_check_branch
      %188 = sbr.rel (0) target = $region29
    $region28: #{tpu_custom_call.1} parent=1 // pred_region
      %190 = vsyncadd [#allocation4], 0
      %s192 = sshll.u32 [#allocation8], 4
      %s193 = int_to_ptr.vmem [resolvable:$true] %s192
      %s194 = sshll.u32 %s3, 4
      %s195 = int_to_ptr.hbm [resolvable:$true] %s194
      %197 = dma.vmem_to_hbm [thread:$0]  %s193, 32, %s195, [#allocation4]
    $region29: #{tpu_custom_call.1} parent=1 // pred_fallthru
      _
    // Predicated region
    $region30: #{tpu_custom_call.1} parent=1 // pred_check
      _
    $region31: #{tpu_custom_call.1} parent=1 // pred_check_branch
      %199 = sbr.rel (0) target = $region33
    $region32: #{tpu_custom_call.1} parent=1 // pred_region
      %201 = dma.done [#allocation4], 32
    $region33: #{tpu_custom_call.1} parent=1 // pred_fallthru
      _
    %202 = vsyncpa [#allocation3], 1
    %203 = vsyncpa [#allocation6], 1
    %204 = vsyncpa [#allocation4], 1

</llo_original>
